<compile_context>
chip_gen: v5e
topology: v5e:2x2
jax: 0.10.0
libtpu: 0.0.40
codegen_flags: <defaults>
</compile_context>

<pallas_src>
import jax
import jax.numpy as jnp
from jax.experimental import pallas as pl
from jax.experimental.pallas import tpu as pltpu


# ---------------------------------------------------------------------------
# Path A (default): zero-HBM-traffic aliased identity.
# ---------------------------------------------------------------------------
def _alias_kernel(x_ref, o_ref):
    # Output buffer aliases the input buffer; the bytes are already in place.
    # pltpu.touch pins a fake read/write dependency so the aliased output is
    # considered produced by this kernel without moving any data.
    del x_ref
    pltpu.touch(o_ref)


def _identity_alias(x):
    return pl.pallas_call(
        _alias_kernel,
        out_shape=jax.ShapeDtypeStruct(x.shape, x.dtype),
        in_specs=[pl.BlockSpec(memory_space=pl.ANY)],
        out_specs=pl.BlockSpec(memory_space=pl.ANY),
        input_output_aliases={0: 0},
    )(x)


# ---------------------------------------------------------------------------
# Path B (opt-in): roofline-bound streaming copy into a fresh buffer.
# ---------------------------------------------------------------------------
def _copy_kernel(x_ref, o_ref):
    o_ref[...] = x_ref[...]


def _sublane_multiple(dtype):
    # Packed-sublane tile height: 8 for 32-bit, 16 for bf16/f16, 32 for 8-bit.
    return 8 * max(1, 4 // jnp.dtype(dtype).itemsize)


def _max_block_bytes():
    # 2 refs x 2 pipeline buffers x block => 4x the block bytes of VMEM.
    # v5e scoped default is 16 MiB -> 2 MiB blocks (8 MiB footprint).
    # v6e/v7x scoped default is 32 MiB -> 4 MiB blocks (16 MiB footprint).
    try:
        kind = jax.devices()[0].device_kind.lower()
    except Exception:
        kind = ""
    if "v6" in kind or "v7" in kind:
        return 4 * 1024 * 1024
    return 2 * 1024 * 1024


def _identity_stream_copy(x):
    orig_shape = x.shape
    total = x.size
    dtype_bytes = jnp.dtype(x.dtype).itemsize
    total_bytes = total * dtype_bytes
    sub = _sublane_multiple(x.dtype)

    # Lane-dense flat view: widest multiple-of-128 last dim that still leaves
    # at least one full packed-sublane tile of rows.  Going wider than 512
    # buys nothing once every store is an unmasked full-width vst, and only
    # reduces row-blocking flexibility.
    lane = None
    for cand in (512, 256, 128):
        if total % cand == 0 and total // cand >= sub:
            lane = cand
            break
    if lane is None and total % 128 == 0:
        lane = 128

    if lane is None:
        # Flat size not a multiple of 128.
        if total_bytes <= 4 * 1024 * 1024:
            # Small: one whole-array block (block == full dims is legal for
            # any shape) — fits VMEM on every generation, incl. v7x 64 MiB.
            return pl.pallas_call(
                _copy_kernel,
                out_shape=jax.ShapeDtypeStruct(x.shape, x.dtype),
                cost_estimate=pl.CostEstimate(
                    flops=0, transcendentals=0, bytes_accessed=2 * total_bytes
                ),
            )(x)
        # TODO(synk): large non-128-multiple arrays would need a padded or
        # manual-DMA chunked copy; use the zero-traffic alias path instead.
        return _identity_alias(x)

    rows = total // lane
    x2 = x.reshape(rows, lane)  # free row-major view change

    row_bytes = lane * dtype_bytes
    max_rows = max(sub, (_max_block_bytes() // row_bytes // sub) * sub)

    if rows <= sub:
        block_rows = rows  # tiny array: single whole-array block
    else:
        # Aim for >=2 blocks on tensors over ~1 MiB so
        # dimension_semantics=("parallel",) can shard across v7x's 2 TCs.
        target_blocks = 2 if total_bytes > (1 << 20) else 1
        block_rows = min(max_rows, pl.cdiv(rows, target_blocks))
        block_rows = max(sub, (block_rows // sub) * sub)
    grid = (pl.cdiv(rows, block_rows),)

    y2 = pl.pallas_call(
        _copy_kernel,
        out_shape=jax.ShapeDtypeStruct((rows, lane), x.dtype),
        grid_spec=pltpu.PrefetchScalarGridSpec(
            num_scalar_prefetch=0,
            grid=grid,
            in_specs=[pl.BlockSpec((block_rows, lane), lambda i: (i, 0))],
            out_specs=pl.BlockSpec((block_rows, lane), lambda i: (i, 0)),
        ),
        compiler_params=pltpu.CompilerParams(
            dimension_semantics=("parallel",),
        ),
        cost_estimate=pl.CostEstimate(
            flops=0, transcendentals=0, bytes_accessed=2 * total_bytes
        ),
    )(x2)
    return y2.reshape(orig_shape)


# ---------------------------------------------------------------------------
# Public wrapper (== Identity.forward).
# ---------------------------------------------------------------------------
def identity(x, *, stream_copy=False):
    """Identity forward pass.

    Default: zero-HBM-traffic Pallas call whose output aliases the input
    (free when the caller donates x; XLA inserts at most one defensive copy
    otherwise).  `stream_copy=True` performs a lane-dense, bandwidth-optimal
    streaming copy into a fresh buffer.
    """
    if x.size == 0:
        return x
    if stream_copy:
        return _identity_stream_copy(x)
    try:
        return _identity_alias(x)
    except Exception:
        # Defensive fallback: the streaming copy is always correct.
        return _identity_stream_copy(x)


if __name__ == "__main__":
    key = jax.random.PRNGKey(0)
    x = jax.random.normal(key, (2, 4, 16, 16), dtype=jnp.float32)

    # Zero-traffic aliased path (default).
    y = jax.block_until_ready(identity(x))
    assert y.shape == x.shape
    assert y.dtype == x.dtype
    assert bool(jnp.all(y == x))

    # Streaming-copy path (fresh output buffer).
    y2 = jax.block_until_ready(identity(x, stream_copy=True))
    assert y2.shape == x.shape
    assert y2.dtype == x.dtype
    assert bool(jnp.all(y2 == x))

    print("KERNEL_OK")
</pallas_src>

<mosaic_0001>
module attributes {stable_mosaic.version = 11 : i64} {
  func.func @_alias_kernel(%arg0: memref<2x4x16x16xf32, #tpu.memory_space<any>>, %arg1: memref<2x4x16x16xf32, #tpu.memory_space<any>>) attributes {dimension_semantics = [], scalar_prefetch = 0 : i64, scratch_operands = 0 : i64, tpu.core_type = #tpu.core_type<tc>} {
    return
  }
}

module attributes {stable_mosaic.version = 11 : i64} {
  func.func @_copy_kernel(%arg0: i32, %arg1: memref<8x256xf32, #tpu.memory_space<vmem>>, %arg2: memref<8x256xf32, #tpu.memory_space<vmem>>) attributes {dimension_semantics = [#tpu.dimension_semantics<parallel>], iteration_bounds = array<i64: 1>, scalar_prefetch = 0 : i64, scratch_operands = 0 : i64, tpu.core_type = #tpu.core_type<tc>, window_params = [{transform_indices = @transform_0, window_bounds = array<i64: 8, 256>}, {transform_indices = @transform_1, window_bounds = array<i64: 8, 256>}]} {
    %c0 = arith.constant 0 : index
    %c0_0 = arith.constant 0 : index
    %0 = vector.load %arg1[%c0, %c0_0] : memref<8x256xf32, #tpu.memory_space<vmem>>, vector<8x256xf32>
    %c0_1 = arith.constant 0 : index
    %c0_2 = arith.constant 0 : index
    %1 = vector.load %arg2[%c0_1, %c0_2] : memref<8x256xf32, #tpu.memory_space<vmem>>, vector<8x256xf32>
    tpu.vector_store %arg2[%c0_1, %c0_2], %0 {strides = array<i32>} : memref<8x256xf32, #tpu.memory_space<vmem>>, vector<8x256xf32>,
    return
  }
  func.func @transform_0(%arg0: i32) -> (i32, i32) {
    %c0_i32 = arith.constant 0 : i32
    %c0_i32_0 = arith.constant 0 : i32
    return %arg0, %c0_i32 : i32, i32
  }
  func.func @transform_1(%arg0: i32) -> (i32, i32) {
    %c0_i32 = arith.constant 0 : i32
    %c0_i32_0 = arith.constant 0 : i32
    return %arg0, %c0_i32 : i32, i32
  }
}

</mosaic_0001>

<llo_original>
// kernel: tpu_custom_call.1
$region0: #{tpu_custom_call.1}
  #allocation0 [shape = 'u32[]', space=smem, size = 0x4, offset = 0x4, fixed_abs, tag = 'smem constant byte address 0x4 - core index']
  #allocation1 [shape = 'u32[72,128]{1,0:T(1,128)}', space=vmem, size = 0x9000, scoped, tag = 'internal scratch']
  %s0 = inlined_call_operand.hbm [shape: f32[2,4,16,16], index: 0, kind: input, shape index: {}, may-alias: {0,1}]
  %s1 = inlined_call_operand.hbm [shape: f32[2,4,16,16], index: 1, kind: output, shape index: {}, may-alias: {0,1}]
  %s2 = sld [smem:[#allocation0]]
  $region2: #{tpu_custom_call.1} parent=0
    _
  %s4 = ssub.s32 1, %s2
  %s5 = scalar_select 0, %s4, %s2

// kernel: tpu_custom_call.1
$region0: #{tpu_custom_call.1}
  #allocation0 [shape = 'u32[]', space=smem, size = 0x4, offset = 0x4, fixed_abs, tag = 'smem constant byte address 0x4 - core index']
  #allocation1 [shape = 'u32[72,128]{1,0:T(1,128)}', space=vmem, size = 0x9000, scoped, tag = 'internal scratch']
  %s0 = inlined_call_operand.hbm [shape: f32[8,256], index: 0, kind: input, shape index: {}]
  %s1 = inlined_call_operand.hbm [shape: f32[8,256], index: 1, kind: output, shape index: {}]
  %s2 = sld [smem:[#allocation0]]
  $region18: #{tpu_custom_call.1} parent=0
    _
  %s4 = ssub.s32 1, %s2
  %s5 = scalar_select 0, %s4, %s2
  $region1: #{tpu_custom_call.1} parent=0
    #allocation2 [shape = 'u8[8192]{0}', space=vmem, size = 0x2000, scoped, tag = 'input window, operand 0, single buffered']
    #allocation3 [shape = 's32[1]{0}', space=sflag, size = 0x4, scoped, tag = 'scoped memory for tpu_custom_call.1']
    #allocation4 [shape = 's32[1]{0}', space=sflag, size = 0x4, scoped, tag = 'scoped memory for tpu_custom_call.1']
    #allocation5 [shape = 'u8[8192]{0}', space=vmem, size = 0x2000, scoped, tag = 'output window, operand 0, single buffered']
    %6 = vsyncpa [#allocation3], 0
    %7 = vsyncpa [#allocation4], 0
    // Predicated region
    $region2: #{tpu_custom_call.1} parent=1 // pred_check
      _
    $region3: #{tpu_custom_call.1} parent=1 // pred_check_branch
      %9 = sbr.rel (0) target = $region5
    $region4: #{tpu_custom_call.1} parent=1 // pred_region
      %11 = vsyncadd [#allocation3], 0
      %s13 = sshll.u32 %s0, 4
      %s14 = int_to_ptr.hbm [resolvable:$true] %s13
      %s15 = sshll.u32 [#allocation2], 4
      %s16 = int_to_ptr.vmem [resolvable:$true] %s15
      %18 = dma.hbm_to_vmem [thread:$0]  %s14, 256, %s16, [#allocation3]
    $region5: #{tpu_custom_call.1} parent=1 // pred_fallthru
      _
    // Predicated region
    $region6: #{tpu_custom_call.1} parent=1 // pred_check
      _
    $region7: #{tpu_custom_call.1} parent=1 // pred_check_branch
      %20 = sbr.rel (0) target = $region9
    $region8: #{tpu_custom_call.1} parent=1 // pred_region
      %22 = dma.done [#allocation3], 256
    $region9: #{tpu_custom_call.1} parent=1 // pred_fallthru
      _
    %v23 = vld [vmem:[#allocation2] sm:$0xff]
    %v24 = vld [vmem:[#allocation2 + $0x8] sm:$0xff]
    %25 = vst [vmem:[#allocation5] sm:$0xff] %v23
    %26 = vst [vmem:[#allocation5 + $0x8] sm:$0xff] %v24
    // Predicated region
    $region10: #{tpu_custom_call.1} parent=1 // pred_check
      _
    $region11: #{tpu_custom_call.1} parent=1 // pred_check_branch
      %28 = sbr.rel (0) target = $region13
    $region12: #{tpu_custom_call.1} parent=1 // pred_region
      %30 = vsyncadd [#allocation4], 0
      %s32 = sshll.u32 [#allocation5], 4
      %s33 = int_to_ptr.vmem [resolvable:$true] %s32
      %s34 = sshll.u32 %s1, 4
      %s35 = int_to_ptr.hbm [resolvable:$true] %s34
      %37 = dma.vmem_to_hbm [thread:$0]  %s33, 256, %s35, [#allocation4]
    $region13: #{tpu_custom_call.1} parent=1 // pred_fallthru
      _
    // Predicated region
    $region14: #{tpu_custom_call.1} parent=1 // pred_check
      _
    $region15: #{tpu_custom_call.1} parent=1 // pred_check_branch
      %39 = sbr.rel (0) target = $region17
    $region16: #{tpu_custom_call.1} parent=1 // pred_region
      %41 = dma.done [#allocation4], 256
    $region17: #{tpu_custom_call.1} parent=1 // pred_fallthru
      _
    %42 = vsyncpa [#allocation3], 1
    %43 = vsyncpa [#allocation4], 1

</llo_original>
